<compile_context>
chip_gen: v5e
topology: v5e:2x2
jax: 0.10.0
libtpu: 0.0.40
codegen_flags: <defaults>
</compile_context>

<pallas_src>
import functools

import numpy as np
import jax
import jax.numpy as jnp
from jax.experimental import pallas as pl
from jax.experimental.pallas import tpu as pltpu

PAD_VALUE = -1
NEG_BIG = -1e30  # stand-in for -inf when masking maxima


def _ctn_cat_loss_kernel(*refs, batch, n_ctn, n_bin, n_groups,
                         assume_onehot_targets):
    """refs = (pred, target, [ctn_mask], [bin_mask], [onehot_mask], out).

    pred/target blocks are feature-major (D, T): the small feature dim D on
    sublanes, the batch tile T on the 128-wide lane axis (lane-dense compute).
    Masks are tiny (D, 1) / (D, G) 0/1 constants resident in VMEM.
    """
    it = iter(refs)
    pred_ref = next(it)
    tgt_ref = next(it)
    ctn_ref = next(it) if n_ctn > 0 else None
    bin_ref = next(it) if n_bin > 0 else None
    oh_ref = next(it) if n_groups > 0 else None
    out_ref = next(it)

    pred = pred_ref[...].astype(jnp.float32)           # (D, T)
    tgt = tgt_ref[...].astype(jnp.float32)              # (D, T)
    d, t = pred.shape

    # Lanes past the real batch (ragged last tile / OOB lanes) must not
    # contribute.  One (1, T) compare; skipped entirely when batch % tile == 0
    # (static Python branch, so fully-divisible runs pay nothing).
    ragged = (batch % t) != 0
    if ragged:
        tile_start = pl.program_id(0) * t
        lane_id = jax.lax.broadcasted_iota(jnp.int32, (1, t), 1) + tile_start
        valid = lane_id < batch                          # (1, T) bool
        validf = valid.astype(jnp.float32)
        pred = jnp.where(valid, pred, 0.0)
        tgt = jnp.where(valid, tgt, 0.0)
    else:
        validf = 1.0

    total = jnp.float32(0.0)

    # ---- continuous columns: MSELoss (mean over selected elements) --------
    if n_ctn > 0:
        ctn_m = ctn_ref[...]                             # (D, 1) 0/1
        diff = pred - tgt                                # invalid lanes are 0
        total += jnp.sum(diff * diff * ctn_m) * (1.0 / float(batch * n_ctn))

    # ---- binary columns: BCEWithLogitsLoss (mean over selected elements) --
    if n_bin > 0:
        bin_m = bin_ref[...]                             # (D, 1) 0/1
        bce = (jnp.maximum(pred, 0.0) - pred * tgt
               + jnp.log1p(jnp.exp(-jnp.abs(pred))))
        total += jnp.sum(bce * bin_m * validf) * (1.0 / float(batch * n_bin))

    # ---- one-hot groups: sum_g CrossEntropy(pred[:,g], argmax(target[:,g]))
    if n_groups > 0:
        oh_m = oh_ref[...]                               # (D, G) 0/1
        union_b = jnp.sum(oh_m, axis=1, keepdims=True) > 0.5    # (D, 1) bool

        # Numerically safe per-group log-sum-exp: each group uses ITS OWN max
        # (scattered back to its rows), one exp pass over the block, then G
        # masked sublane reductions.  No MXU, no union-max underflow.
        mx_rows = jnp.zeros((d, t), jnp.float32)
        group_max = []
        for g in range(n_groups):                        # static, small G
            gm = oh_m[:, g:g + 1] > 0.5                  # (D, 1) bool
            m_g = jnp.max(jnp.where(gm, pred, NEG_BIG), axis=0, keepdims=True)
            group_max.append((gm, m_g))
            mx_rows = jnp.where(gm, m_g, mx_rows)        # (D, T)
        ex = jnp.exp(jnp.minimum(pred - mx_rows, 0.0))   # one EUP pass, <= 1

        lse_sum = jnp.zeros((1, t), jnp.float32)
        for gm, m_g in group_max:
            denom = jnp.sum(jnp.where(gm, ex, 0.0), axis=0, keepdims=True)
            lse_sum = lse_sum + jnp.log(denom) + m_g     # denom >= 1 always

        if assume_onehot_targets:
            # Groups are disjoint and targets are exactly one-hot per group,
            # so sum_g(target-class logit) == sum over union rows of pred*tgt.
            # NOTE: with soft labels / label smoothing this is the target-
            # weighted logit, NOT torch's argmax-class logit -- use
            # assume_onehot_targets=False for exact torch semantics.
            sel_sum = jnp.sum(jnp.where(union_b, pred * tgt, 0.0),
                              axis=0, keepdims=True)     # (1, T)
        else:
            # Exact torch argmax (first-max tie-break) per group.
            row_idx = jax.lax.broadcasted_iota(jnp.int32, (d, t), 0)
            sel_sum = jnp.zeros((1, t), jnp.float32)
            for g in range(n_groups):
                gm = oh_m[:, g:g + 1] > 0.5
                t_m = jnp.where(gm, tgt, NEG_BIG)
                t_mx = jnp.max(t_m, axis=0, keepdims=True)
                is_max = jnp.logical_and(gm, t_m == t_mx)
                amax = jnp.min(jnp.where(is_max, row_idx, d), axis=0,
                               keepdims=True)
                sel_sum += jnp.sum(jnp.where(row_idx == amax, pred, 0.0),
                                   axis=0, keepdims=True)

        total += jnp.sum((lse_sum - sel_sum) * validf) * (1.0 / float(batch))

    # Lane-dense (1, 1, 128) partial-loss block for this tile.
    out_ref[...] = total + jnp.zeros((1, 1, 128), jnp.float32)


def _round_up(x, m):
    return ((x + m - 1) // m) * m


def _vmem_budgets():
    """(per-tile byte budget, vmem_limit_bytes), generation-aware."""
    cap = None
    try:
        cap = int(pltpu.get_tpu_info().vmem_capacity_bytes)
    except Exception:
        cap = None
    if cap is not None and cap <= 64 * 1024 * 1024:
        # v7x-class: only 64 MiB physical VMEM per TensorCore.
        return 20 * 1024 * 1024, 32 * 1024 * 1024
    # v5e / v6e: 128 MiB physical -- raise the scoped limit past the default.
    return 48 * 1024 * 1024, 80 * 1024 * 1024


def _auto_tile(d, itemsize, tile_budget):
    """Largest 128-multiple batch tile whose pipelined transport buffers
    (2 inputs x 2 buffers) plus ~8 live f32 (D, T) temporaries fit the budget."""
    sub = 32 if itemsize == 1 else (16 if itemsize == 2 else 8)
    per_lane = 2 * 2 * _round_up(d, sub) * itemsize + 8 * _round_up(d, 8) * 4
    tn = tile_budget // per_lane
    return int(max(128, min(8192, (tn // 128) * 128)))


def ctn_cat_loss(pred, target, ctn_cols_idx, bin_cols_idx, onehot_cols_idx,
                 *, tile_n=None, assume_onehot_targets=True):
    """pred/target: (N, D) float arrays (f32 or bf16 -- bf16 halves HBM bytes;
    the kernel upcasts to f32 internally).  Index args: host numpy int arrays;
    onehot_cols_idx is (G, max_len) padded with PAD_VALUE.

    assume_onehot_targets=True uses sum(pred*target) per group as the target
    class logit; this equals torch CrossEntropyLoss(pred, argmax(target)) only
    when targets are exactly one-hot -- pass False for soft labels.
    """
    pred = jnp.asarray(pred)
    target = jnp.asarray(target)
    n, d = pred.shape

    ctn_cols_idx = np.asarray(ctn_cols_idx).reshape(-1)
    bin_cols_idx = np.asarray(bin_cols_idx).reshape(-1)
    onehot_cols_idx = np.asarray(onehot_cols_idx)
    groups = []
    if onehot_cols_idx.size:
        for row in onehot_cols_idx:
            g = row[row != PAD_VALUE]
            if g.size:
                groups.append(g)
    n_ctn, n_bin, n_groups = len(ctn_cols_idx), len(bin_cols_idx), len(groups)

    # ---- batch-tile size from a generation-aware VMEM budget ---------------
    itemsize = jnp.dtype(pred.dtype).itemsize
    tile_budget, vmem_limit = _vmem_budgets()
    if tile_n is None:
        tn = _auto_tile(d, itemsize, tile_budget)
    else:
        tn = max(128, _round_up(int(tile_n), 128))    # lane axis: 128-aligned
    # v7x megacore: keep >= 2 grid steps when there is enough work so the
    # "parallel" axis actually splits across both TensorCores.
    if n > 256 and pl.cdiv(n, tn) < 2:
        tn = _round_up((n + 1) // 2, 128)
    if tn >= n:
        tn = n                 # single full-extent block (always layout-legal)
    num_tiles = pl.cdiv(n, tn)

    # ---- feature-major relayout: lanes carry batch, sublanes carry D -------
    # For D << 128 this makes every vector op lane-dense; the transpose is
    # layout plumbing and disappears if the caller already stores activations
    # feature-major.
    pred_t = jnp.transpose(pred)       # (D, N)
    target_t = jnp.transpose(target)   # (D, N)

    # Operand list: only the masks that are actually needed (each skipped
    # input is one less DMA + resident VMEM buffer).
    operands = [pred_t, target_t]
    in_specs = [pl.BlockSpec((d, tn), lambda i: (0, i)),
                pl.BlockSpec((d, tn), lambda i: (0, i))]
    if n_ctn:
        m = np.zeros((d, 1), np.float32)
        m[ctn_cols_idx, 0] = 1.0
        operands.append(jnp.asarray(m))
        in_specs.append(pl.BlockSpec((d, 1), lambda i: (0, 0)))
    if n_bin:
        m = np.zeros((d, 1), np.float32)
        m[bin_cols_idx, 0] = 1.0
        operands.append(jnp.asarray(m))
        in_specs.append(pl.BlockSpec((d, 1), lambda i: (0, 0)))
    if n_groups:
        m = np.zeros((d, n_groups), np.float32)
        for gi, g in enumerate(groups):
            m[g, gi] = 1.0
        operands.append(jnp.asarray(m))
        in_specs.append(pl.BlockSpec((d, n_groups), lambda i: (0, 0)))

    kernel = functools.partial(
        _ctn_cat_loss_kernel,
        batch=int(n), n_ctn=int(n_ctn), n_bin=int(n_bin),
        n_groups=int(n_groups),
        assume_onehot_targets=bool(assume_onehot_targets))

    cost = pl.CostEstimate(
        flops=int(n * d * (12 + 6 * max(n_groups, 1))),
        transcendentals=int(3 * n * d),
        bytes_accessed=int(2 * n * d * itemsize))

    partials = pl.pallas_call(
        kernel,
        out_shape=jax.ShapeDtypeStruct((num_tiles, 1, 128), jnp.float32),
        grid=(num_tiles,),
        in_specs=in_specs,
        out_specs=pl.BlockSpec((1, 1, 128), lambda i: (i, 0, 0)),
        compiler_params=pltpu.CompilerParams(
            dimension_semantics=("parallel",),
            vmem_limit_bytes=vmem_limit),
        cost_estimate=cost,
    )(*operands)

    return jnp.sum(partials[:, 0, 0])


def reference_loss(pred, target, ctn_cols_idx, bin_cols_idx, onehot_cols_idx):
    """Pure-JAX replica of torch CtnCatLoss.forward (MSE + BCEWithLogits + CE)."""
    loss = jnp.float32(0.0)
    # one-hot groups: CrossEntropyLoss(pred[:, g], argmax(target[:, g])), summed
    for row in np.asarray(onehot_cols_idx):
        g = row[row != PAD_VALUE]
        logits = pred[:, g]
        labels = jnp.argmax(target[:, g], axis=-1)
        logp = jax.nn.log_softmax(logits, axis=-1)
        loss += -jnp.mean(jnp.take_along_axis(logp, labels[:, None], axis=-1))
    # binary columns: BCEWithLogitsLoss (mean)
    x = pred[:, np.asarray(bin_cols_idx)]
    y = target[:, np.asarray(bin_cols_idx)]
    loss += jnp.mean(jnp.maximum(x, 0.0) - x * y + jnp.log1p(jnp.exp(-jnp.abs(x))))
    # continuous columns: MSELoss (mean)
    p = pred[:, np.asarray(ctn_cols_idx)]
    t = target[:, np.asarray(ctn_cols_idx)]
    loss += jnp.mean((p - t) ** 2)
    return loss


# TODO(synk): torchmetrics `Metric` loss variants (stateful metrics + reset) have
# no Pallas equivalent; only the standard _Loss path (MSE/BCE/CE) is implemented.

if __name__ == "__main__":
    # Column layout (D = 13 features):
    #   continuous: [0, 1, 2, 3]
    #   binary:     [4, 5]
    #   one-hot:    group0 = [6, 7, 8] (3 classes), group1 = [9, 10, 11, 12] (4)
    ctn_cols_idx = np.array([0, 1, 2, 3], np.int32)
    bin_cols_idx = np.array([4, 5], np.int32)
    onehot_cols_idx = np.array([[6, 7, 8, PAD_VALUE],
                                [9, 10, 11, 12]], np.int32)

    def make_inputs(key, n):
        k1, k2, k3, k4, k5 = jax.random.split(key, 5)
        pred = jax.random.normal(k1, (n, 13), jnp.float32)
        t_ctn = jax.random.normal(k2, (n, 4), jnp.float32)
        t_bin = jax.random.bernoulli(k3, 0.5, (n, 2)).astype(jnp.float32)
        t_oh0 = jax.nn.one_hot(jax.random.randint(k4, (n,), 0, 3), 3,
                               dtype=jnp.float32)
        t_oh1 = jax.nn.one_hot(jax.random.randint(k5, (n,), 0, 4), 4,
                               dtype=jnp.float32)
        target = jnp.concatenate([t_ctn, t_bin, t_oh0, t_oh1], axis=1)
        return pred, target

    key = jax.random.PRNGKey(0)
    k_a, k_b = jax.random.split(key)

    # 1) tiny single-block case (tile == full batch, matches the original toy)
    pred, target = make_inputs(k_a, 8)
    out = jax.block_until_ready(
        ctn_cat_loss(pred, target, ctn_cols_idx, bin_cols_idx, onehot_cols_idx))
    ref = jax.block_until_ready(
        reference_loss(pred, target, ctn_cols_idx, bin_cols_idx, onehot_cols_idx))
    np.testing.assert_allclose(np.asarray(out), np.asarray(ref),
                               rtol=1e-5, atol=5e-5)

    # 2) multi-tile case with a ragged last tile via the auto VMEM-budget tile
    #    formula (N=300 -> 2 tiles of 256 lanes, 44 valid lanes in the last;
    #    exercises the pipeline and the lane-validity masking).
    pred2, target2 = make_inputs(k_b, 300)
    out2 = jax.block_until_ready(
        ctn_cat_loss(pred2, target2, ctn_cols_idx, bin_cols_idx,
                     onehot_cols_idx))
    ref2 = jax.block_until_ready(
        reference_loss(pred2, target2, ctn_cols_idx, bin_cols_idx,
                       onehot_cols_idx))
    np.testing.assert_allclose(np.asarray(out2), np.asarray(ref2),
                               rtol=1e-5, atol=5e-5)

    # 3) bf16 transport (halves HBM bytes; kernel upcasts to f32), forced
    #    128-lane tiles -> 3 grid steps.  Reference uses the identical
    #    bf16-rounded inputs so only accumulation-order error remains.
    pred3 = pred2.astype(jnp.bfloat16)
    target3 = target2.astype(jnp.bfloat16)
    out3 = jax.block_until_ready(
        ctn_cat_loss(pred3, target3, ctn_cols_idx, bin_cols_idx,
                     onehot_cols_idx, tile_n=128))
    ref3 = jax.block_until_ready(
        reference_loss(pred3.astype(jnp.float32), target3.astype(jnp.float32),
                       ctn_cols_idx, bin_cols_idx, onehot_cols_idx))
    np.testing.assert_allclose(np.asarray(out3), np.asarray(ref3),
                               rtol=1e-4, atol=1e-4)

    print("KERNEL_OK")
</pallas_src>

<mosaic_0001>
module attributes {stable_mosaic.version = 11 : i64} {
  func.func @_ctn_cat_loss_kernel(%arg0: i32, %arg1: memref<13x8xf32, #tpu.memory_space<vmem>>, %arg2: memref<13x8xf32, #tpu.memory_space<vmem>>, %arg3: memref<13x1xf32, #tpu.memory_space<vmem>>, %arg4: memref<13x1xf32, #tpu.memory_space<vmem>>, %arg5: memref<13x2xf32, #tpu.memory_space<vmem>>, %arg6: memref<1x1x128xf32, #tpu.memory_space<vmem>>) attributes {dimension_semantics = [#tpu.dimension_semantics<parallel>], iteration_bounds = array<i64: 1>, scalar_prefetch = 0 : i64, scratch_operands = 0 : i64, tpu.core_type = #tpu.core_type<tc>, window_params = [{transform_indices = @transform_0, window_bounds = array<i64: 13, 8>}, {transform_indices = @transform_1, window_bounds = array<i64: 13, 8>}, {pipeline_mode = #tpu.pipeline_mode<synchronous>, transform_indices = @transform_2, window_bounds = array<i64: 13, 1>}, {pipeline_mode = #tpu.pipeline_mode<synchronous>, transform_indices = @transform_3, window_bounds = array<i64: 13, 1>}, {pipeline_mode = #tpu.pipeline_mode<synchronous>, transform_indices = @transform_4, window_bounds = array<i64: 13, 2>}, {transform_indices = @transform_5, window_bounds = array<i64: 1, 1, 128>}]} {
    %c0 = arith.constant 0 : index
    %c0_0 = arith.constant 0 : index
    %0 = vector.load %arg1[%c0, %c0_0] : memref<13x8xf32, #tpu.memory_space<vmem>>, vector<13x8xf32>
    %c0_1 = arith.constant 0 : index
    %c0_2 = arith.constant 0 : index
    %1 = vector.load %arg2[%c0_1, %c0_2] : memref<13x8xf32, #tpu.memory_space<vmem>>, vector<13x8xf32>
    %c0_3 = arith.constant 0 : index
    %c0_4 = arith.constant 0 : index
    %2 = vector.load %arg3[%c0_3, %c0_4] : memref<13x1xf32, #tpu.memory_space<vmem>>, vector<13x1xf32>
    %3 = arith.subf %0, %1 : vector<13x8xf32>
    %4 = arith.mulf %3, %3 : vector<13x8xf32>
    %5 = vector.broadcast %2 : vector<13x1xf32> to vector<13x8xf32>
    %6 = arith.mulf %4, %5 : vector<13x8xf32>
    %7 = vector.shape_cast %6 : vector<13x8xf32> to vector<1x13x8xf32>
    %cst = arith.constant dense<0.000000e+00> : vector<1xf32>
    %8 = vector.multi_reduction <add>, %7, %cst [1, 2] : vector<1x13x8xf32> to vector<1xf32>
    %9 = vector.shape_cast %8 : vector<1xf32> to vector<1x1x1xf32>
    %10 = vector.extract %9[0, 0, 0] : f32 from vector<1x1x1xf32>
    %cst_5 = arith.constant 3.125000e-02 : f32
    %11 = arith.mulf %10, %cst_5 : f32
    %cst_6 = arith.constant 0.000000e+00 : f32
    %12 = arith.addf %cst_6, %11 : f32
    %c0_7 = arith.constant 0 : index
    %c0_8 = arith.constant 0 : index
    %13 = vector.load %arg4[%c0_7, %c0_8] : memref<13x1xf32, #tpu.memory_space<vmem>>, vector<13x1xf32>
    %cst_9 = arith.constant 0.000000e+00 : f32
    %14 = vector.broadcast %cst_9 : f32 to vector<13x8xf32>
    %15 = arith.maximumf %0, %14 : vector<13x8xf32>
    %16 = arith.mulf %0, %1 : vector<13x8xf32>
    %17 = arith.subf %15, %16 : vector<13x8xf32>
    %18 = math.absf %0 : vector<13x8xf32>
    %cst_10 = arith.constant 0.000000e+00 : f32
    %19 = vector.broadcast %cst_10 : f32 to vector<13x8xf32>
    %20 = arith.subf %19, %18 : vector<13x8xf32>
    %21 = math.exp %20 : vector<13x8xf32>
    %22 = math.log1p %21 : vector<13x8xf32>
    %23 = arith.addf %17, %22 : vector<13x8xf32>
    %24 = vector.broadcast %13 : vector<13x1xf32> to vector<13x8xf32>
    %25 = arith.mulf %23, %24 : vector<13x8xf32>
    %cst_11 = arith.constant 1.000000e+00 : f32
    %26 = vector.broadcast %cst_11 : f32 to vector<13x8xf32>
    %27 = arith.mulf %25, %26 : vector<13x8xf32>
    %28 = vector.shape_cast %27 : vector<13x8xf32> to vector<1x13x8xf32>
    %cst_12 = arith.constant dense<0.000000e+00> : vector<1xf32>
    %29 = vector.multi_reduction <add>, %28, %cst_12 [1, 2] : vector<1x13x8xf32> to vector<1xf32>
    %30 = vector.shape_cast %29 : vector<1xf32> to vector<1x1x1xf32>
    %31 = vector.extract %30[0, 0, 0] : f32 from vector<1x1x1xf32>
    %cst_13 = arith.constant 6.250000e-02 : f32
    %32 = arith.mulf %31, %cst_13 : f32
    %33 = arith.addf %12, %32 : f32
    %c0_14 = arith.constant 0 : index
    %c0_15 = arith.constant 0 : index
    %34 = vector.load %arg5[%c0_14, %c0_15] : memref<13x2xf32, #tpu.memory_space<vmem>>, vector<13x2xf32>
    %cst_16 = arith.constant dense<0.000000e+00> : vector<13xf32>
    %35 = vector.multi_reduction <add>, %34, %cst_16 [1] : vector<13x2xf32> to vector<13xf32>
    %36 = vector.shape_cast %35 : vector<13xf32> to vector<13x1xf32>
    %cst_17 = arith.constant 5.000000e-01 : f32
    %37 = vector.broadcast %cst_17 : f32 to vector<13x1xf32>
    %38 = arith.cmpf ogt, %36, %37 : vector<13x1xf32>
    %cst_18 = arith.constant 0.000000e+00 : f32
    %39 = vector.broadcast %cst_18 : f32 to vector<13x8xf32>
    %40 = vector.extract_strided_slice %34 {offsets = [0, 0], sizes = [13, 1], strides = [1, 1]} : vector<13x2xf32> to vector<13x1xf32>
    %cst_19 = arith.constant 5.000000e-01 : f32
    %41 = vector.broadcast %cst_19 : f32 to vector<13x1xf32>
    %42 = arith.cmpf ogt, %40, %41 : vector<13x1xf32>
    %cst_20 = arith.constant -1.000000e+30 : f32
    %43 = vector.shape_cast %42 : vector<13x1xi1> to vector<13x1xi1>
    %44 = vector.broadcast %43 : vector<13x1xi1> to vector<13x8xi1>
    %45 = vector.broadcast %cst_20 : f32 to vector<13x8xf32>
    %46 = arith.select %44, %0, %45 : vector<13x8xi1>, vector<13x8xf32>
    %cst_21 = arith.constant dense<0xFF800000> : vector<8xf32>
    %47 = vector.multi_reduction <maximumf>, %46, %cst_21 [0] : vector<13x8xf32> to vector<8xf32>
    %48 = vector.shape_cast %47 : vector<8xf32> to vector<1x8xf32>
    %49 = vector.shape_cast %42 : vector<13x1xi1> to vector<13x1xi1>
    %50 = vector.broadcast %49 : vector<13x1xi1> to vector<13x8xi1>
    %51 = vector.shape_cast %48 : vector<1x8xf32> to vector<1x8xf32>
    %52 = vector.broadcast %51 : vector<1x8xf32> to vector<13x8xf32>
    %53 = arith.select %50, %52, %39 : vector<13x8xi1>, vector<13x8xf32>
    %54 = vector.extract_strided_slice %34 {offsets = [0, 1], sizes = [13, 1], strides = [1, 1]} : vector<13x2xf32> to vector<13x1xf32>
    %cst_22 = arith.constant 5.000000e-01 : f32
    %55 = vector.broadcast %cst_22 : f32 to vector<13x1xf32>
    %56 = arith.cmpf ogt, %54, %55 : vector<13x1xf32>
    %cst_23 = arith.constant -1.000000e+30 : f32
    %57 = vector.shape_cast %56 : vector<13x1xi1> to vector<13x1xi1>
    %58 = vector.broadcast %57 : vector<13x1xi1> to vector<13x8xi1>
    %59 = vector.broadcast %cst_23 : f32 to vector<13x8xf32>
    %60 = arith.select %58, %0, %59 : vector<13x8xi1>, vector<13x8xf32>
    %cst_24 = arith.constant dense<0xFF800000> : vector<8xf32>
    %61 = vector.multi_reduction <maximumf>, %60, %cst_24 [0] : vector<13x8xf32> to vector<8xf32>
    %62 = vector.shape_cast %61 : vector<8xf32> to vector<1x8xf32>
    %63 = vector.shape_cast %56 : vector<13x1xi1> to vector<13x1xi1>
    %64 = vector.broadcast %63 : vector<13x1xi1> to vector<13x8xi1>
    %65 = vector.shape_cast %62 : vector<1x8xf32> to vector<1x8xf32>
    %66 = vector.broadcast %65 : vector<1x8xf32> to vector<13x8xf32>
    %67 = arith.select %64, %66, %53 : vector<13x8xi1>, vector<13x8xf32>
    %68 = arith.subf %0, %67 : vector<13x8xf32>
    %cst_25 = arith.constant 0.000000e+00 : f32
    %69 = vector.broadcast %cst_25 : f32 to vector<13x8xf32>
    %70 = arith.minimumf %68, %69 : vector<13x8xf32>
    %71 = math.exp %70 : vector<13x8xf32>
    %cst_26 = arith.constant 0.000000e+00 : f32
    %72 = vector.broadcast %cst_26 : f32 to vector<1x8xf32>
    %cst_27 = arith.constant 0.000000e+00 : f32
    %73 = vector.shape_cast %42 : vector<13x1xi1> to vector<13x1xi1>
    %74 = vector.broadcast %73 : vector<13x1xi1> to vector<13x8xi1>
    %75 = vector.broadcast %cst_27 : f32 to vector<13x8xf32>
    %76 = arith.select %74, %71, %75 : vector<13x8xi1>, vector<13x8xf32>
    %cst_28 = arith.constant dense<0.000000e+00> : vector<8xf32>
    %77 = vector.multi_reduction <add>, %76, %cst_28 [0] : vector<13x8xf32> to vector<8xf32>
    %78 = vector.shape_cast %77 : vector<8xf32> to vector<1x8xf32>
    %79 = math.log %78 : vector<1x8xf32>
    %80 = arith.addf %72, %79 : vector<1x8xf32>
    %81 = arith.addf %80, %48 : vector<1x8xf32>
    %cst_29 = arith.constant 0.000000e+00 : f32
    %82 = vector.shape_cast %56 : vector<13x1xi1> to vector<13x1xi1>
    %83 = vector.broadcast %82 : vector<13x1xi1> to vector<13x8xi1>
    %84 = vector.broadcast %cst_29 : f32 to vector<13x8xf32>
    %85 = arith.select %83, %71, %84 : vector<13x8xi1>, vector<13x8xf32>
    %cst_30 = arith.constant dense<0.000000e+00> : vector<8xf32>
    %86 = vector.multi_reduction <add>, %85, %cst_30 [0] : vector<13x8xf32> to vector<8xf32>
    %87 = vector.shape_cast %86 : vector<8xf32> to vector<1x8xf32>
    %88 = math.log %87 : vector<1x8xf32>
    %89 = arith.addf %81, %88 : vector<1x8xf32>
    %90 = arith.addf %89, %62 : vector<1x8xf32>
    %91 = arith.mulf %0, %1 : vector<13x8xf32>
    %cst_31 = arith.constant 0.000000e+00 : f32
    %92 = vector.shape_cast %38 : vector<13x1xi1> to vector<13x1xi1>
    %93 = vector.broadcast %92 : vector<13x1xi1> to vector<13x8xi1>
    %94 = vector.broadcast %cst_31 : f32 to vector<13x8xf32>
    %95 = arith.select %93, %91, %94 : vector<13x8xi1>, vector<13x8xf32>
    %cst_32 = arith.constant dense<0.000000e+00> : vector<8xf32>
    %96 = vector.multi_reduction <add>, %95, %cst_32 [0] : vector<13x8xf32> to vector<8xf32>
    %97 = vector.shape_cast %96 : vector<8xf32> to vector<1x8xf32>
    %98 = arith.subf %90, %97 : vector<1x8xf32>
    %cst_33 = arith.constant 1.000000e+00 : f32
    %99 = vector.broadcast %cst_33 : f32 to vector<1x8xf32>
    %100 = arith.mulf %98, %99 : vector<1x8xf32>
    %101 = vector.shape_cast %100 : vector<1x8xf32> to vector<1x1x8xf32>
    %cst_34 = arith.constant dense<0.000000e+00> : vector<1xf32>
    %102 = vector.multi_reduction <add>, %101, %cst_34 [1, 2] : vector<1x1x8xf32> to vector<1xf32>
    %103 = vector.shape_cast %102 : vector<1xf32> to vector<1x1x1xf32>
    %104 = vector.extract %103[0, 0, 0] : f32 from vector<1x1x1xf32>
    %cst_35 = arith.constant 1.250000e-01 : f32
    %105 = arith.mulf %104, %cst_35 : f32
    %106 = arith.addf %33, %105 : f32
    %cst_36 = arith.constant 0.000000e+00 : f32
    %107 = vector.broadcast %cst_36 : f32 to vector<1x1x128xf32>
    %108 = vector.broadcast %106 : f32 to vector<1x1x128xf32>
    %109 = arith.addf %108, %107 : vector<1x1x128xf32>
    %c0_37 = arith.constant 0 : index
    %c0_38 = arith.constant 0 : index
    %c0_39 = arith.constant 0 : index
    %110 = vector.load %arg6[%c0_37, %c0_38, %c0_39] : memref<1x1x128xf32, #tpu.memory_space<vmem>>, vector<1x1x128xf32>
    tpu.vector_store %arg6[%c0_37, %c0_38, %c0_39], %109 {strides = array<i32>} : memref<1x1x128xf32, #tpu.memory_space<vmem>>, vector<1x1x128xf32>,
    return
  }
  func.func @transform_0(%arg0: i32) -> (i32, i32) {
    %c0_i32 = arith.constant 0 : i32
    %c0_i32_0 = arith.constant 0 : i32
    return %c0_i32, %arg0 : i32, i32
  }
  func.func @transform_1(%arg0: i32) -> (i32, i32) {
    %c0_i32 = arith.constant 0 : i32
    %c0_i32_0 = arith.constant 0 : i32
    return %c0_i32, %arg0 : i32, i32
  }
  func.func @transform_2(%arg0: i32) -> (i32, i32) {
    %c0_i32 = arith.constant 0 : i32
    %c0_i32_0 = arith.constant 0 : i32
    %c0_i32_1 = arith.constant 0 : i32
    return %c0_i32, %c0_i32_0 : i32, i32
  }
  func.func @transform_3(%arg0: i32) -> (i32, i32) {
    %c0_i32 = arith.constant 0 : i32
    %c0_i32_0 = arith.constant 0 : i32
    %c0_i32_1 = arith.constant 0 : i32
    return %c0_i32, %c0_i32_0 : i32, i32
  }
  func.func @transform_4(%arg0: i32) -> (i32, i32) {
    %c0_i32 = arith.constant 0 : i32
    %c0_i32_0 = arith.constant 0 : i32
    %c0_i32_1 = arith.constant 0 : i32
    return %c0_i32, %c0_i32_0 : i32, i32
  }
  func.func @transform_5(%arg0: i32) -> (i32, i32, i32) {
    %c0_i32 = arith.constant 0 : i32
    %c0_i32_0 = arith.constant 0 : i32
    %c0_i32_1 = arith.constant 0 : i32
    return %arg0, %c0_i32, %c0_i32_0 : i32, i32, i32
  }
}

</mosaic_0001>

<llo_original>
// kernel: tpu_custom_call.1
$region0: #{tpu_custom_call.1}
  #allocation0 [shape = 'u32[]', space=smem, size = 0x4, offset = 0x4, fixed_abs, tag = 'smem constant byte address 0x4 - core index']
  #allocation1 [shape = 'u32[72,128]{1,0:T(1,128)}', space=vmem, size = 0x9000, scoped, tag = 'internal scratch']
  %s0 = inlined_call_operand.vmem [shape: f32[13,8], index: 0, kind: input, shape index: {}]
  %s1 = inlined_call_operand.vmem [shape: f32[13,8], index: 1, kind: input, shape index: {}]
  %s2 = inlined_call_operand.vmem [shape: f32[13,1], index: 2, kind: input, shape index: {}]
  %s3 = inlined_call_operand.vmem [shape: f32[13,1], index: 3, kind: input, shape index: {}]
  %s4 = inlined_call_operand.vmem [shape: f32[13,2], index: 4, kind: input, shape index: {}]
  %s5 = inlined_call_operand.hbm [shape: f32[1,1,128], index: 5, kind: output, shape index: {}]
  %s6 = sld [smem:[#allocation0]]
  $region30: #{tpu_custom_call.1} parent=0
    _
  %s8 = ssub.s32 1, %s6
  %s9 = scalar_select 0, %s8, %s6
  $region1: #{tpu_custom_call.1} parent=0
    #allocation2 [shape = 'u8[512]{0}', space=vmem, size = 0x400, scoped, tag = 'output window, operand 0, single buffered']
    #allocation3 [shape = 's32[1]{0}', space=sflag, size = 0x4, scoped, tag = 'scoped memory for tpu_custom_call.1']
    %10 = vsyncpa [#allocation3], 0
    // Predicated region
    $region2: #{tpu_custom_call.1} parent=1 // pred_check
      _
    $region3: #{tpu_custom_call.1} parent=1 // pred_check_branch
      %12 = sbr.rel (0) target = $region5
    $region4: #{tpu_custom_call.1} parent=1 // pred_region
      _
    $region5: #{tpu_custom_call.1} parent=1 // pred_fallthru
      _
    // Predicated region
    $region6: #{tpu_custom_call.1} parent=1 // pred_check
      _
    $region7: #{tpu_custom_call.1} parent=1 // pred_check_branch
      %14 = sbr.rel (0) target = $region9
    $region8: #{tpu_custom_call.1} parent=1 // pred_region
      _
    $region9: #{tpu_custom_call.1} parent=1 // pred_fallthru
      _
    // Predicated region
    $region10: #{tpu_custom_call.1} parent=1 // pred_check
      _
    $region11: #{tpu_custom_call.1} parent=1 // pred_check_branch
      %16 = sbr.rel (0) target = $region13
    $region12: #{tpu_custom_call.1} parent=1 // pred_region
      _
    $region13: #{tpu_custom_call.1} parent=1 // pred_fallthru
      _
    // Predicated region
    $region14: #{tpu_custom_call.1} parent=1 // pred_check
      _
    $region15: #{tpu_custom_call.1} parent=1 // pred_check_branch
      %18 = sbr.rel (0) target = $region17
    $region16: #{tpu_custom_call.1} parent=1 // pred_region
      _
    $region17: #{tpu_custom_call.1} parent=1 // pred_fallthru
      _
    // Predicated region
    $region18: #{tpu_custom_call.1} parent=1 // pred_check
      _
    $region19: #{tpu_custom_call.1} parent=1 // pred_check_branch
      %20 = sbr.rel (0) target = $region21
    $region20: #{tpu_custom_call.1} parent=1 // pred_region
      _
    $region21: #{tpu_custom_call.1} parent=1 // pred_fallthru
      _
    %v21 = vld [vmem:[%s0] sm:$0xff]
    %v22 = vld [vmem:[%s0 + $0x8] sm:$0x1f]
    %v23 = vld [vmem:[%s1] sm:$0xff]
    %v24 = vld [vmem:[%s1 + $0x8] sm:$0x1f]
    %v25 = vld [vmem:[%s2] sm:$0xff]
    %v26 = vld [vmem:[%s2 + $0x8] sm:$0x1f]
    %v27 = vsub.f32 %v21, %v23
    %v28 = vsub.f32 %v22, %v24
    %v29 = vmul.f32 %v27, %v27
    %v30 = vmul.f32 %v28, %v28
    %32 = vset.pattern.permute.xlu0 0
    %33 = vperm.xlu0 %32, %v25
    %v34 = vpop.permute.xlu0 %33
    %37 = vset.pattern.permute.xlu0 0
    %38 = vperm.xlu0 %37, %v26
    %v39 = vpop.permute.xlu0 %38
    %v41 = vmul.f32 %v29, %v34
    %v42 = vmul.f32 %v30, %v39
    %vm43 = vcmask 64512
    %v44 = vsel %vm43, %v41, 0.0
    %vm45 = vcmask 61440
    %v46 = vsel %vm45, %v42, 0.0
    %v47 = vadd.f32 %v44, %v46
    %48 = vadd.xlane.f32.xlu0 %v47
    %v49 = vpop.xlane.xlu0 %48
    %v50 = vrot.slane %v49, 4
    %v51 = vadd.f32 %v49, %v50
    %v52 = vrot.slane %v51, 2
    %v53 = vadd.f32 %v51, %v52
    %v54 = vrot.slane %v53, 1
    %v55 = vadd.f32 %v53, %v54
    %s56 = vtos %v55
    %s57 = smul.f32 %s56, 0.03125
    %s58 = sadd.f32 %s57, 0.0
    %v59 = vld [vmem:[%s3] sm:$0xff]
    %v60 = vld [vmem:[%s3 + $0x8] sm:$0x1f]
    %v61 = vmax.f32 %v21, 0.0
    %v62 = vmax.f32 %v22, 0.0
    %v63 = vmul.f32 %v21, %v23
    %v64 = vmul.f32 %v22, %v24
    %v65 = vsub.f32 %v61, %v63
    %v66 = vsub.f32 %v62, %v64
    %v67 = vand.u32 2147483647, %v21
    %v68 = vand.u32 2147483647, %v22
    %v69 = vsub.f32 0.0, %v67
    %v70 = vsub.f32 0.0, %v68
    %v71 = vmul.f32 %v69, 1.442695
    %v72 = vpow.pop %v71
    %v73 = vmul.f32 %v70, 1.442695
    %v74 = vpow.pop %v73
    %v75 = vadd.f32 %v72, 1.0
    %v76 = vlog2.pop %v75
    %v77 = vmul.f32 %v76, 0.6931472
    %v78 = vmul.f32 -0.5, %v72
    %v79 = vadd.f32 %v78, 1.0
    %v80 = vmul.f32 %v79, %v72
    %v81 = vand.u32 2147483647, %v72
    %vm82 = vcmp.lt.f32.partialorder %v81, 0.0004427343
    %v83 = vsel %vm82, %v80, %v77
    %v84 = vadd.f32 %v74, 1.0
    %v85 = vlog2.pop %v84
    %v86 = vmul.f32 %v85, 0.6931472
    %v87 = vmul.f32 -0.5, %v74
    %v88 = vadd.f32 %v87, 1.0
    %v89 = vmul.f32 %v88, %v74
    %v90 = vand.u32 2147483647, %v74
    %vm91 = vcmp.lt.f32.partialorder %v90, 0.0004427343
    %v92 = vsel %vm91, %v89, %v86
    %v93 = vadd.f32 %v65, %v83
    %v94 = vadd.f32 %v66, %v92
    %96 = vset.pattern.permute.xlu0 0
    %97 = vperm.xlu0 %96, %v59
    %v98 = vpop.permute.xlu0 %97
    %101 = vset.pattern.permute.xlu0 0
    %102 = vperm.xlu0 %101, %v60
    %v103 = vpop.permute.xlu0 %102
    %v105 = vmul.f32 %v93, %v98
    %v106 = vmul.f32 %v94, %v103
    %v107 = vsel %vm43, %v105, 0.0
    %v108 = vsel %vm45, %v106, 0.0
    %v109 = vadd.f32 %v107, %v108
    %110 = vadd.xlane.f32.xlu0 %v109
    %v111 = vpop.xlane.xlu0 %110
    %v112 = vrot.slane %v111, 4
    %v113 = vadd.f32 %v111, %v112
    %v114 = vrot.slane %v113, 2
    %v115 = vadd.f32 %v113, %v114
    %v116 = vrot.slane %v115, 1
    %v117 = vadd.f32 %v115, %v116
    %s118 = vtos %v117
    %s119 = smul.f32 %s118, 0.0625
    %s120 = sadd.f32 %s58, %s119
    %v121 = vld [vmem:[%s4] sm:$0xff]
    %v122 = vld [vmem:[%s4 + $0x8] sm:$0x1f]
    %vm123 = vcmask 15360
    %v124 = vsel %vm123, %v121, 0.0
    %125 = vadd.xlane.f32.xlu0 %v124
    %v126 = vpop.xlane.xlu0 %125
    %vm127 = vcmask 12288
    %v128 = vsel %vm127, %v122, 0.0
    %129 = vadd.xlane.f32.xlu0 %v128
    %v130 = vpop.xlane.xlu0 %129
    %vm131 = vcmp.gt.f32.partialorder %v126, 0.5
    %vm132 = vcmp.gt.f32.partialorder %v130, 0.5
    %vm133 = vcmp.gt.f32.partialorder %v121, 0.5
    %vm134 = vcmp.gt.f32.partialorder %v122, 0.5
    %v135 = vsel %vm133, 1, 0
    %v136 = vsel %vm134, 1, 0
    %137 = vset.pattern.permute.xlu0 0
    %138 = vperm.xlu0 %137, %v135
    %v139 = vpop.permute.xlu0 %138
    %140 = vset.pattern.permute.xlu0 0
    %141 = vperm.xlu0 %140, %v136
    %v142 = vpop.permute.xlu0 %141
    %vm143 = vcmp.eq.s32.totalorder %v139, 1
    %vm144 = vcmp.eq.s32.totalorder %v142, 1
    %v145 = vsel %vm143, %v21, -1e+30
    %v146 = vsel %vm144, %v22, -1e+30
    %v147 = vsel %vm43, %v145, -inf
    %v148 = vsel %vm45, %v146, -inf
    %v149 = vmax.f32 %v147, %v148
    %v150 = vrot.slane %v149, 4
    %v151 = vmax.f32 %v149, %v150
    %v152 = vrot.slane %v151, 2
    %v153 = vmax.f32 %v151, %v152
    %v154 = vrot.slane %v153, 1
    %v155 = vmax.f32 %v153, %v154
    %v156 = vsel %vm143, %v155, 0.0
    %v157 = vsel %vm144, %v155, 0.0
    %158 = vset.pattern.permute.xlu0 1
    %159 = vperm.xlu0 %158, %v135
    %v160 = vpop.permute.xlu0 %159
    %161 = vset.pattern.permute.xlu0 1
    %162 = vperm.xlu0 %161, %v136
    %v163 = vpop.permute.xlu0 %162
    %vm164 = vcmp.eq.s32.totalorder %v160, 1
    %vm165 = vcmp.eq.s32.totalorder %v163, 1
    %v166 = vsel %vm164, %v21, -1e+30
    %v167 = vsel %vm165, %v22, -1e+30
    %v168 = vsel %vm43, %v166, -inf
    %v169 = vsel %vm45, %v167, -inf
    %v170 = vmax.f32 %v168, %v169
    %v171 = vrot.slane %v170, 4
    %v172 = vmax.f32 %v170, %v171
    %v173 = vrot.slane %v172, 2
    %v174 = vmax.f32 %v172, %v173
    %v175 = vrot.slane %v174, 1
    %v176 = vmax.f32 %v174, %v175
    %v177 = vsel %vm164, %v176, %v156
    %v178 = vsel %vm165, %v176, %v157
    %v179 = vsub.f32 %v21, %v177
    %v180 = vsub.f32 %v22, %v178
    %v181 = vmin.f32 %v179, 0.0
    %v182 = vmin.f32 %v180, 0.0
    %v183 = vmul.f32 %v181, 1.442695
    %v184 = vpow.pop %v183
    %v185 = vmul.f32 %v182, 1.442695
    %v186 = vpow.pop %v185
    %v187 = vsel %vm143, %v184, 0.0
    %v188 = vsel %vm144, %v186, 0.0
    %v189 = vsel %vm43, %v187, 0.0
    %v190 = vsel %vm45, %v188, 0.0
    %v191 = vadd.f32 %v189, %v190
    %v192 = vrot.slane %v191, 4
    %v193 = vadd.f32 %v191, %v192
    %v194 = vrot.slane %v193, 2
    %v195 = vadd.f32 %v193, %v194
    %v196 = vrot.slane %v195, 1
    %v197 = vadd.f32 %v195, %v196
    %v198 = vlog2.pop %v197
    %v199 = vmul.f32 %v198, 0.6931472
    %v200 = vadd.f32 %v199, 0.0
    %v201 = vadd.f32 %v200, %v155
    %v202 = vsel %vm164, %v184, 0.0
    %v203 = vsel %vm165, %v186, 0.0
    %v204 = vsel %vm43, %v202, 0.0
    %v205 = vsel %vm45, %v203, 0.0
    %v206 = vadd.f32 %v204, %v205
    %v207 = vrot.slane %v206, 4
    %v208 = vadd.f32 %v206, %v207
    %v209 = vrot.slane %v208, 2
    %v210 = vadd.f32 %v208, %v209
    %v211 = vrot.slane %v210, 1
    %v212 = vadd.f32 %v210, %v211
    %v213 = vlog2.pop %v212
    %v214 = vmul.f32 %v213, 0.6931472
    %v215 = vadd.f32 %v201, %v214
    %v216 = vadd.f32 %v215, %v176
    %v217 = vsel %vm131, 1, 0
    %v218 = vsel %vm132, 1, 0
    %vm219 = vcmp.eq.s32.totalorder %v217, 1
    %vm220 = vcmp.eq.s32.totalorder %v218, 1
    %v221 = vsel %vm219, %v63, 0.0
    %v222 = vsel %vm220, %v64, 0.0
    %v223 = vsel %vm43, %v221, 0.0
    %v224 = vsel %vm45, %v222, 0.0
    %v225 = vadd.f32 %v223, %v224
    %v226 = vrot.slane %v225, 4
    %v227 = vadd.f32 %v225, %v226
    %v228 = vrot.slane %v227, 2
    %v229 = vadd.f32 %v227, %v228
    %v230 = vrot.slane %v229, 1
    %v231 = vadd.f32 %v229, %v230
    %v232 = vsub.f32 %v216, %v231
    %vm233 = vcmask 57344
    %v234 = vsel %vm233, %v232, 0.0
    %235 = vadd.xlane.f32.xlu0 %v234
    %v236 = vpop.xlane.xlu0 %235
    %v237 = vrot.slane %v236, 4
    %v238 = vadd.f32 %v236, %v237
    %v239 = vrot.slane %v238, 2
    %v240 = vadd.f32 %v238, %v239
    %v241 = vrot.slane %v240, 1
    %v242 = vadd.f32 %v240, %v241
    %s243 = vtos %v242
    %s244 = smul.f32 %s243, 0.125
    %s245 = sadd.f32 %s120, %s244
    %v246 = vstv %s245
    %v247 = vadd.f32 %v246, 0.0
    %248 = vst [vmem:[#allocation2] sm:$0x1] %v247
    // Predicated region
    $region22: #{tpu_custom_call.1} parent=1 // pred_check
      _
    $region23: #{tpu_custom_call.1} parent=1 // pred_check_branch
      %250 = sbr.rel (0) target = $region25
    $region24: #{tpu_custom_call.1} parent=1 // pred_region
      %252 = vsyncadd [#allocation3], 0
      %s254 = sshll.u32 [#allocation2], 4
      %s255 = int_to_ptr.vmem [resolvable:$true] %s254
      %s256 = sshll.u32 %s5, 4
      %s257 = int_to_ptr.hbm [resolvable:$true] %s256
      %259 = dma.vmem_to_hbm [thread:$0]  %s255, 16, %s257, [#allocation3]
    $region25: #{tpu_custom_call.1} parent=1 // pred_fallthru
      _
    // Predicated region
    $region26: #{tpu_custom_call.1} parent=1 // pred_check
      _
    $region27: #{tpu_custom_call.1} parent=1 // pred_check_branch
      %261 = sbr.rel (0) target = $region29
    $region28: #{tpu_custom_call.1} parent=1 // pred_region
      %263 = dma.done [#allocation3], 16
    $region29: #{tpu_custom_call.1} parent=1 // pred_fallthru
      _
    %264 = vsyncpa [#allocation3], 1

</llo_original>
